<compile_context>
chip_gen: v6e
topology: v6e:2x2x1
jax: 0.10.0
libtpu: 0.0.40
codegen_flags: <defaults>
</compile_context>

<pallas_src>
import functools

import jax
import jax.numpy as jnp
from jax import lax
from jax.experimental import pallas as pl
from jax.experimental.pallas import tpu as pltpu


_NEG_BIG = -1e30  # bias for padded/OOV vocab columns -> exp() underflows to exactly 0


# --------------------------------------------------------------------------- helpers
def _round_up(x, m):
    return ((x + m - 1) // m) * m


def _vmem_est(tm, tv, vp, d, cache_bytes, s):
    return (2 * tm * d * 2          # x tile, bf16, double-buffered
            + 2 * d * tv * 2        # weight tile, bf16, double-buffered
            + 2 * tv * 4            # bias tile, f32, double-buffered
            + 2 * tm * tv * 4       # output tile, f32, double-buffered
            + tm * vp * cache_bytes  # logits cache scratch (single copy)
            + 4 * tm * max(s, 1) * 4  # alpha / attn_w / enc-id tiles (small)
            + (2 << 20))            # slack for semaphores / stats scratch


def _plan(n_rows, vp, d, s=1):
    """Pick (row tile, vocab tile, cache dtype, vmem_limit) under a 48 MiB budget
    (fits the 128 MiB VMEM of v5e/v6e and the 64 MiB of v7x with headroom)."""
    budget = 48 << 20
    tm = min(256, _round_up(max(int(n_rows), 1), 8))
    tv0 = max(t for t in (1024, 512, 256, 128) if vp % t == 0)
    while True:
        cache_dtype = jnp.float32 if tm * vp * 4 <= (8 << 20) else jnp.bfloat16
        cb = jnp.dtype(cache_dtype).itemsize
        tv = tv0
        while tv > 128 and _vmem_est(tm, tv, vp, d, cb, s) > budget:
            tv //= 2
        if _vmem_est(tm, tv, vp, d, cb, s) <= budget or tm <= 64:
            break
        tm = max(64, tm // 2)
    # TODO(synk): for extremely large vocab*row-tile even a bf16 logits cache can
    # exceed the budget; a no-cache 2-pass (weight re-stream) fallback would be needed.
    vmem_limit = int(min(max(_vmem_est(tm, tv, vp, d, cb, s) + (4 << 20), 32 << 20),
                         64 << 20))
    return tm, tv, cache_dtype, vmem_limit


# --------------------------------------------------------------------------- kernels
def _log_softmax_kernel(x_ref, w_ref, b_ref, out_ref, m_sc, l_sc, cache_sc):
    """grid = (batch, row_tiles, pass(2), vocab_tiles).
    pass 0: logits tile (single MXU matmul) -> cache + online max/sum stats.
    pass 1: read the cached logits (no second weight stream) and emit log-probs."""
    p = pl.program_id(2)
    v = pl.program_id(3)

    @pl.when((p == 0) & (v == 0))
    def _():
        m_sc[...] = jnp.full_like(m_sc, -jnp.inf)
        l_sc[...] = jnp.zeros_like(l_sc)

    @pl.when(p == 0)
    def _():
        logits = jnp.dot(x_ref[...], w_ref[...],
                         preferred_element_type=jnp.float32) + b_ref[...]
        cache_sc[v] = logits.astype(cache_sc.dtype)
        m_old = m_sc[...]
        m_new = jnp.maximum(m_old, jnp.max(logits, axis=-1, keepdims=True))
        l_sc[...] = (l_sc[...] * jnp.exp(m_old - m_new)
                     + jnp.sum(jnp.exp(logits - m_new), axis=-1, keepdims=True))
        m_sc[...] = m_new

    @pl.when(p == 1)
    def _():
        logits = cache_sc[v].astype(jnp.float32)
        out_ref[...] = logits - (m_sc[...] + jnp.log(l_sc[...]))


def _pointer_gen_kernel(x_ref, w_ref, b_ref, alpha_ref, attnw_ref, enc_ref,
                        out_ref, m_sc, l_sc, cache_sc, *, inv_temp, tv):
    """grid = (batch, row_tiles, pass(2), vocab_tiles).
    alpha (=sigmoid(p_gen)) and attn_w (=(1-alpha)*softmax(attn/temp)) are computed
    in the wrapper; the kernel only streams the projection weight once per row tile."""
    p = pl.program_id(2)
    v = pl.program_id(3)

    @pl.when((p == 0) & (v == 0))
    def _():
        m_sc[...] = jnp.full_like(m_sc, -jnp.inf)
        l_sc[...] = jnp.zeros_like(l_sc)

    @pl.when(p == 0)
    def _():
        logits = (jnp.dot(x_ref[...], w_ref[...],
                          preferred_element_type=jnp.float32)
                  + b_ref[...]) * inv_temp
        cache_sc[v] = logits.astype(cache_sc.dtype)
        m_old = m_sc[...]
        m_new = jnp.maximum(m_old, jnp.max(logits, axis=-1, keepdims=True))
        l_sc[...] = (l_sc[...] * jnp.exp(m_old - m_new)
                     + jnp.sum(jnp.exp(logits - m_new), axis=-1, keepdims=True))
        m_sc[...] = m_new

    @pl.when(p == 1)
    def _():
        logits = cache_sc[v].astype(jnp.float32)
        lse = m_sc[...] + jnp.log(l_sc[...])
        gen = alpha_ref[...] * jnp.exp(logits - lse)                 # (TM, TV)
        # scatter_add restricted to this vocab tile: lane-dense (S, TV) one-hot @ MXU.
        ids = enc_ref[...]                                           # (S, 1) int32
        col = v * tv + lax.broadcasted_iota(jnp.int32, (ids.shape[0], tv), 1)
        oh = (ids == col).astype(jnp.bfloat16)                       # (S, TV)
        copy = lax.dot_general(attnw_ref[...].astype(jnp.bfloat16), oh,
                               dimension_numbers=(((1,), (0,)), ((), ())),
                               preferred_element_type=jnp.float32)   # (TM, TV)
        out_ref[...] = jnp.log(gen + copy + 1e-18)


# --------------------------------------------------------------------------- wrappers
def proj_log_softmax_forward(x, w_pad, bias_pad):
    """x: (Bk, Tk, D) f32; w_pad: (D, Vw) bf16 (128-aligned, zero pad cols);
    bias_pad: (Bb, Vb) f32 (-1e30 in pad cols), Bb in {1, Bk}.
    Returns (Bk, Tk, Vw) log-probs over the padded vocab (caller slices to V)."""
    Bk, Tk, D = x.shape
    vp = w_pad.shape[1]
    tm, tv, cache_dtype, vmem_limit = _plan(Tk, vp, D)
    tp = _round_up(Tk, tm)

    xb = x.astype(jnp.bfloat16)
    if tp != Tk:
        xb = jnp.pad(xb, ((0, 0), (0, tp - Tk), (0, 0)))
    Bb, Vb = bias_pad.shape
    if Vb != vp:
        bias_pad = jnp.pad(bias_pad, ((0, 0), (0, vp - Vb)), constant_values=_NEG_BIG)
    bias3 = bias_pad[:, None, :]                                      # (Bb, 1, vp)
    bidx = (lambda b, t, p, v: (b, 0, v)) if Bb > 1 else (lambda b, t, p, v: (0, 0, v))

    out = pl.pallas_call(
        _log_softmax_kernel,
        out_shape=jax.ShapeDtypeStruct((Bk, tp, vp), jnp.float32),
        grid_spec=pltpu.PrefetchScalarGridSpec(
            num_scalar_prefetch=0,
            grid=(Bk, tp // tm, 2, vp // tv),
            in_specs=[
                pl.BlockSpec((None, tm, D), lambda b, t, p, v: (b, t, 0)),    # x
                # weight index pinned to tile 0 during pass 1 -> streamed once.
                pl.BlockSpec((D, tv), lambda b, t, p, v: (0, v * (1 - p))),   # W tile
                pl.BlockSpec((None, 1, tv), bidx),                            # bias row
            ],
            out_specs=pl.BlockSpec((None, tm, tv), lambda b, t, p, v: (b, t, v * p)),
            scratch_shapes=[pltpu.VMEM((tm, 1), jnp.float32),          # running max
                            pltpu.VMEM((tm, 1), jnp.float32),          # running sum
                            pltpu.VMEM((vp // tv, tm, tv), cache_dtype)],  # logits cache
        ),
        compiler_params=pltpu.CompilerParams(
            dimension_semantics=("parallel", "parallel", "arbitrary", "arbitrary"),
            vmem_limit_bytes=vmem_limit),
    )(xb, w_pad, bias3)
    return out if tp == Tk else out[:, :Tk]


def pointer_generator_forward(x, w_pad, bias_pad, alpha, attn_w, enc_ids, *,
                              v_ext, temp):
    """x: (B, T, D) f32; w_pad: (D, Vw) bf16 zero-padded; bias_pad: (Bb, Vb) f32 with
    -1e30 pad; alpha: (B, T, 1) f32; attn_w = (1-alpha)*softmax(attn/temp): (B, T, S);
    enc_ids: (B, S) int32 in [0, v_ext). Returns (B, T, Vp) log mixture (caller slices)."""
    B, T, D = x.shape
    S = attn_w.shape[-1]
    vp = _round_up(max(int(v_ext), 1), 128)
    tm, tv, cache_dtype, vmem_limit = _plan(T, vp, D, s=S)
    tp = _round_up(T, tm)

    xb = x.astype(jnp.bfloat16)
    if tp != T:
        xb = jnp.pad(xb, ((0, 0), (0, tp - T), (0, 0)))
        alpha = jnp.pad(alpha, ((0, 0), (0, tp - T), (0, 0)))
        attn_w = jnp.pad(attn_w, ((0, 0), (0, tp - T), (0, 0)))
    Vw = w_pad.shape[1]
    if vp > Vw:   # extended vocab pushed past the init-time 128-aligned pad (rare)
        w_pad = jnp.pad(w_pad, ((0, 0), (0, vp - Vw)))
    Bb, Vb = bias_pad.shape
    if Vb != vp:
        bias_pad = jnp.pad(bias_pad, ((0, 0), (0, vp - Vb)), constant_values=_NEG_BIG)
    bias3 = bias_pad[:, None, :]                                      # (Bb, 1, vp)
    bidx = (lambda b, t, p, v: (b, 0, v)) if Bb > 1 else (lambda b, t, p, v: (0, 0, v))
    enc3 = enc_ids.astype(jnp.int32)[:, :, None]                      # (B, S, 1)
    alpha = alpha.astype(jnp.float32)
    attn_w = attn_w.astype(jnp.float32)

    kernel = functools.partial(_pointer_gen_kernel, inv_temp=1.0 / float(temp), tv=tv)
    out = pl.pallas_call(
        kernel,
        out_shape=jax.ShapeDtypeStruct((B, tp, vp), jnp.float32),
        grid_spec=pltpu.PrefetchScalarGridSpec(
            num_scalar_prefetch=0,
            grid=(B, tp // tm, 2, vp // tv),
            in_specs=[
                pl.BlockSpec((None, tm, D), lambda b, t, p, v: (b, t, 0)),    # x
                pl.BlockSpec((D, tv), lambda b, t, p, v: (0, v * (1 - p))),   # W tile
                pl.BlockSpec((None, 1, tv), bidx),                            # bias row
                pl.BlockSpec((None, tm, 1), lambda b, t, p, v: (b, t, 0)),    # alpha
                pl.BlockSpec((None, tm, S), lambda b, t, p, v: (b, t, 0)),    # attn_w
                pl.BlockSpec((None, S, 1), lambda b, t, p, v: (b, 0, 0)),     # enc ids
            ],
            out_specs=pl.BlockSpec((None, tm, tv), lambda b, t, p, v: (b, t, v * p)),
            scratch_shapes=[pltpu.VMEM((tm, 1), jnp.float32),          # running max
                            pltpu.VMEM((tm, 1), jnp.float32),          # running sum
                            pltpu.VMEM((vp // tv, tm, tv), cache_dtype)],  # logits cache
        ),
        compiler_params=pltpu.CompilerParams(
            dimension_semantics=("parallel", "parallel", "arbitrary", "arbitrary"),
            vmem_limit_bytes=vmem_limit),
    )(xb, w_pad, bias3, alpha, attn_w, enc3)
    return out if tp == T else out[:, :T]


# --------------------------------------------------------------------------- module
class Args:
    def __init__(self, hidden_dim, pointer_gen):
        self.hidden_dim = hidden_dim
        self.pointer_gen = pointer_gen


def _init_linear(key, fan_in, fan_out):
    # deterministic init mimicking torch.nn.Linear (uniform in +-1/sqrt(fan_in)).
    kw, kb = jax.random.split(key)
    bound = 1.0 / (fan_in ** 0.5)
    w = jax.random.uniform(kw, (fan_in, fan_out), jnp.float32, -bound, bound)
    b = jax.random.uniform(kb, (fan_out,), jnp.float32, -bound, bound)
    return w, b


class GeneratorPallas:
    """JAX/Pallas port of the PyTorch Generator (linear + softmax generation step)."""

    def __init__(self, args, d_model, vocab, key):
        self.args = args
        self.d_model = d_model
        self.vocab = vocab
        k1, k2, k3 = jax.random.split(key, 3)
        w_proj, b_proj = _init_linear(k1, d_model, vocab)
        w_emo, b_emo = _init_linear(k2, 2 * d_model, vocab)
        w_pgen, b_pgen = _init_linear(k3, args.hidden_dim, 1)

        # Kernel-side weights: 128-aligned, bf16, padded/split ONCE at init (no
        # per-call jnp.pad on the big projection weight).
        v128 = _round_up(vocab, 128)
        pad = v128 - vocab
        self.w_proj_pad = jnp.pad(w_proj, ((0, 0), (0, pad))).astype(jnp.bfloat16)
        self.w_emo_x_pad = jnp.pad(w_emo[:d_model], ((0, 0), (0, pad))).astype(jnp.bfloat16)
        self.w_emo_pe = w_emo[d_model:].astype(jnp.bfloat16)          # (D, V)
        self.b_proj_pad = jnp.pad(b_proj, (0, pad), constant_values=_NEG_BIG)[None, :]
        self.b_emo = b_emo
        self.w_pgen = w_pgen[:, 0]
        self.b_pgen = b_pgen[0]

        # Reference-side params (same arithmetic: bf16 matmul operands, f32 accum).
        self.params = dict(
            w_proj=w_proj.astype(jnp.bfloat16), b_proj=b_proj,
            w_emo=w_emo.astype(jnp.bfloat16), b_emo=b_emo,
            w_pgen=w_pgen[:, 0], b_pgen=b_pgen[0])

    def __call__(self, x, pred_emotion=None, emotion_context=None, attn_dist=None,
                 enc_batch_extend_vocab=None, extra_zeros=None, temp=1.0):
        B, T, D = x.shape
        V = self.vocab
        temp = float(temp)
        assert temp > 1e-6, "temp too small: -1e30 * (1/temp) would overflow f32"

        if emotion_context is not None:
            # emo_proj(cat(x, pe)) == x @ W_x + (pe @ W_pe + b_emo): the second term
            # is a per-batch (1, V) bias row -> never materialize the (B, T, 2D) cat.
            w_pad = self.w_emo_x_pad
            pe = pred_emotion[:, 0, :].astype(jnp.bfloat16)            # (B, D)
            bias = (jnp.dot(pe, self.w_emo_pe, preferred_element_type=jnp.float32)
                    + self.b_emo[None, :])                             # (B, V) per-batch
        else:
            w_pad = self.w_proj_pad
            bias = self.b_proj_pad                                     # (1, V128) shared

        if self.args.pointer_gen:
            n_extra = 0 if extra_zeros is None else int(extra_zeros.shape[-1])
            v_ext = V + n_extra
            # Hoisted tiny per-row ops (off the weight-streaming critical path).
            p_gen = (jnp.einsum("btd,d->bt", x, self.w_pgen)[..., None]
                     + self.b_pgen)                                    # (B, T, 1)
            alpha = jax.nn.sigmoid(p_gen)
            attn_w = (1.0 - alpha) * jax.nn.softmax(attn_dist / temp, axis=-1)
            out = pointer_generator_forward(
                x, w_pad, bias, alpha, attn_w, enc_batch_extend_vocab,
                v_ext=v_ext, temp=temp)
            # slice only when the extended vocab isn't already 128-aligned
            return out if out.shape[-1] == v_ext else out[:, :, :v_ext]

        if bias.shape[0] > 1:      # per-batch (emotion) bias: keep the batch grid axis
            out = proj_log_softmax_forward(x, w_pad, bias)
        else:                      # shared bias: fold (B, T) rows for denser MXU tiles
            out = proj_log_softmax_forward(x.reshape(1, B * T, D), w_pad, bias)
            out = out.reshape(B, T, out.shape[-1])
        return out if out.shape[-1] == V else out[:, :, :V]


# --------------------------------------------------------------------------- reference
def reference(params, args, x, pred_emotion, emotion_context, attn_dist,
              enc_ids, extra_zeros, temp):
    # Mirrors the PyTorch Generator.forward; the big projections use the same
    # bf16-operand / f32-accumulate arithmetic as the kernel.
    B, T, D = x.shape
    xb = x.astype(jnp.bfloat16)
    if args.pointer_gen:
        p_gen = (jnp.sum(x * params["w_pgen"][None, None, :], axis=-1, keepdims=True)
                 + params["b_pgen"])
        alpha = jax.nn.sigmoid(p_gen)
    if emotion_context is not None:
        pe = jnp.broadcast_to(pred_emotion, (B, T, pred_emotion.shape[-1]))
        xc = jnp.concatenate([xb, pe.astype(jnp.bfloat16)], axis=2)
        logit = (jnp.dot(xc, params["w_emo"], preferred_element_type=jnp.float32)
                 + params["b_emo"])
    else:
        logit = (jnp.dot(xb, params["w_proj"], preferred_element_type=jnp.float32)
                 + params["b_proj"])
    if args.pointer_gen:
        vocab_dist = jax.nn.softmax(logit / temp, axis=2)
        vocab_dist_ = alpha * vocab_dist
        attn = jax.nn.softmax(attn_dist / temp, axis=-1)
        attn_ = (1.0 - alpha) * attn
        if extra_zeros is not None:
            ez = jnp.broadcast_to(extra_zeros[:, None, :],
                                  (B, T, extra_zeros.shape[-1]))
            vocab_dist_ = jnp.concatenate([vocab_dist_, ez], axis=2)
        v_ext = vocab_dist_.shape[-1]
        oh = jax.nn.one_hot(enc_ids, v_ext, dtype=jnp.bfloat16)
        scattered = jnp.einsum("bts,bsv->btv", attn_.astype(jnp.bfloat16), oh,
                               preferred_element_type=jnp.float32)
        return jnp.log(vocab_dist_ + scattered + 1e-18)
    return jax.nn.log_softmax(logit, axis=-1)


# --------------------------------------------------------------------------- main
if __name__ == "__main__":
    B, T, S, D, V, n_extra = 2, 8, 16, 32, 120, 8

    key = jax.random.PRNGKey(0)
    k1, k2, k3, k4 = jax.random.split(key, 4)
    x = jax.random.normal(k1, (B, T, D), jnp.float32)
    attn = jax.random.normal(k2, (B, T, S), jnp.float32)
    enc_ids = jax.random.randint(k3, (B, S), 0, V + n_extra, jnp.int32)
    pred_emotion = jax.random.normal(k4, (B, 1, D), jnp.float32)
    emotion_context = jnp.ones((B, D), jnp.float32)     # presence flag only
    extra_zeros = jnp.zeros((B, n_extra), jnp.float32)

    def check(out, ref, name):
        assert out.shape == ref.shape, (name, out.shape, ref.shape)
        # tolerance covers bf16 MXU operands (kernel vs XLA accumulation order)
        assert jnp.allclose(out, ref, rtol=5e-3, atol=5e-3), \
            f"{name}: max |err| = {float(jnp.max(jnp.abs(out - ref)))}"

    # 1) pointer-gen + emotion projection + OOV extension
    args_pg = Args(hidden_dim=D, pointer_gen=True)
    gen = GeneratorPallas(args_pg, D, V, jax.random.PRNGKey(42))
    out1 = gen(x, pred_emotion=pred_emotion, emotion_context=emotion_context,
               attn_dist=attn, enc_batch_extend_vocab=enc_ids,
               extra_zeros=extra_zeros, temp=1.0)
    jax.block_until_ready(out1)
    ref1 = reference(gen.params, args_pg, x, pred_emotion, emotion_context,
                     attn, enc_ids, extra_zeros, 1.0)
    check(out1, ref1, "pointer+emotion")

    # 2) pointer-gen, no emotion, no OOV extension
    enc_ids_v = enc_ids % V
    out2 = gen(x, attn_dist=attn, enc_batch_extend_vocab=enc_ids_v, temp=1.0)
    jax.block_until_ready(out2)
    ref2 = reference(gen.params, args_pg, x, None, None, attn, enc_ids_v, None, 1.0)
    check(out2, ref2, "pointer")

    # 3) plain log-softmax (rows folded to B*T)
    args_ls = Args(hidden_dim=D, pointer_gen=False)
    gen_ls = GeneratorPallas(args_ls, D, V, jax.random.PRNGKey(42))
    out3 = gen_ls(x)
    jax.block_until_ready(out3)
    ref3 = reference(gen_ls.params, args_ls, x, None, None, None, None, None, 1.0)
    check(out3, ref3, "log_softmax")

    # 4) emotion + log-softmax (per-batch bias path)
    out4 = gen_ls(x, pred_emotion=pred_emotion, emotion_context=emotion_context)
    jax.block_until_ready(out4)
    ref4 = reference(gen_ls.params, args_ls, x, pred_emotion, emotion_context,
                     None, None, None, 1.0)
    check(out4, ref4, "log_softmax+emotion")

    print("KERNEL_OK")
</pallas_src>

<mosaic_0001>
module attributes {stable_mosaic.version = 11 : i64} {
  func.func @_pointer_gen_kernel(%arg0: i32, %arg1: i32, %arg2: i32, %arg3: i32, %arg4: memref<1x8x32xbf16, #tpu.memory_space<vmem>>, %arg5: memref<32x128xbf16, #tpu.memory_space<vmem>>, %arg6: memref<1x1x128xf32, #tpu.memory_space<vmem>>, %arg7: memref<1x8x1xf32, #tpu.memory_space<vmem>>, %arg8: memref<1x8x16xf32, #tpu.memory_space<vmem>>, %arg9: memref<1x16x1xi32, #tpu.memory_space<vmem>>, %arg10: memref<1x8x128xf32, #tpu.memory_space<vmem>>, %arg11: memref<8x1xf32, #tpu.memory_space<vmem>>, %arg12: memref<8x1xf32, #tpu.memory_space<vmem>>, %arg13: memref<1x8x128xf32, #tpu.memory_space<vmem>>) attributes {dimension_semantics = [#tpu.dimension_semantics<parallel>, #tpu.dimension_semantics<parallel>, #tpu.dimension_semantics<arbitrary>, #tpu.dimension_semantics<arbitrary>], iteration_bounds = array<i64: 2, 1, 2, 1>, scalar_prefetch = 0 : i64, scratch_operands = 3 : i64, tpu.core_type = #tpu.core_type<tc>, window_params = [{transform_indices = @transform_0, window_bounds = array<i64: 1, 8, 32>}, {transform_indices = @transform_1, window_bounds = array<i64: 32, 128>}, {transform_indices = @transform_2, window_bounds = array<i64: 1, 1, 128>}, {transform_indices = @transform_3, window_bounds = array<i64: 1, 8, 1>}, {transform_indices = @transform_4, window_bounds = array<i64: 1, 8, 16>}, {transform_indices = @transform_5, window_bounds = array<i64: 1, 16, 1>}, {transform_indices = @transform_6, window_bounds = array<i64: 1, 8, 128>}]} {
    %c0_i32 = arith.constant 0 : i32
    %0 = arith.cmpi eq, %arg2, %c0_i32 : i32
    %c0_i32_0 = arith.constant 0 : i32
    %1 = arith.cmpi eq, %arg3, %c0_i32_0 : i32
    %2 = arith.andi %0, %1 : i1
    %3 = arith.extui %2 : i1 to i32
    %c0_i32_1 = arith.constant 0 : i32
    %4 = arith.cmpi ne, %3, %c0_i32_1 : i32
    scf.if %4 {
      %cst = arith.constant 0xFF800000 : f32
      %11 = vector.broadcast %cst : f32 to vector<8x1xf32>
      %c0 = arith.constant 0 : index
      %c0_5 = arith.constant 0 : index
      %12 = vector.load %arg11[%c0, %c0_5] : memref<8x1xf32, #tpu.memory_space<vmem>>, vector<8x1xf32>
      tpu.vector_store %arg11[%c0, %c0_5], %11 {strides = array<i32>} : memref<8x1xf32, #tpu.memory_space<vmem>>, vector<8x1xf32>,
      %cst_6 = arith.constant 0.000000e+00 : f32
      %13 = vector.broadcast %cst_6 : f32 to vector<8x1xf32>
      %c0_7 = arith.constant 0 : index
      %c0_8 = arith.constant 0 : index
      %14 = vector.load %arg12[%c0_7, %c0_8] : memref<8x1xf32, #tpu.memory_space<vmem>>, vector<8x1xf32>
      tpu.vector_store %arg12[%c0_7, %c0_8], %13 {strides = array<i32>} : memref<8x1xf32, #tpu.memory_space<vmem>>, vector<8x1xf32>,
    } else {
    }
    %c0_i32_2 = arith.constant 0 : i32
    %5 = arith.cmpi eq, %arg2, %c0_i32_2 : i32
    %6 = arith.extui %5 : i1 to i32
    %c0_i32_3 = arith.constant 0 : i32
    %7 = arith.cmpi ne, %6, %c0_i32_3 : i32
    scf.if %7 {
      %c0 = arith.constant 0 : index
      %c0_5 = arith.constant 0 : index
      %c0_6 = arith.constant 0 : index
      %11 = vector.load %arg4[%c0, %c0_5, %c0_6] : memref<1x8x32xbf16, #tpu.memory_space<vmem>>, vector<1x8x32xbf16>
      %12 = vector.shape_cast %11 : vector<1x8x32xbf16> to vector<8x32xbf16>
      %c0_7 = arith.constant 0 : index
      %c0_8 = arith.constant 0 : index
      %13 = vector.load %arg5[%c0_7, %c0_8] : memref<32x128xbf16, #tpu.memory_space<vmem>>, vector<32x128xbf16>
      %cst = arith.constant dense<0.000000e+00> : vector<8x128xf32>
      %14 = tpu.matmul %12, %13, %cst {dimension_numbers = #tpu.dot_dimension_numbers<[1], [0], [0], [1], [0, 0, 1, 1], [], []>} : vector<8x32xbf16>, vector<32x128xbf16>, vector<8x128xf32> -> vector<8x128xf32>
      %c0_9 = arith.constant 0 : index
      %c0_10 = arith.constant 0 : index
      %c0_11 = arith.constant 0 : index
      %15 = vector.load %arg6[%c0_9, %c0_10, %c0_11] : memref<1x1x128xf32, #tpu.memory_space<vmem>>, vector<1x1x128xf32>
      %16 = vector.shape_cast %15 : vector<1x1x128xf32> to vector<1x128xf32>
      %17 = vector.broadcast %16 : vector<1x128xf32> to vector<8x128xf32>
      %18 = arith.addf %14, %17 : vector<8x128xf32>
      %cst_12 = arith.constant 1.000000e+00 : f32
      %19 = vector.broadcast %cst_12 : f32 to vector<8x128xf32>
      %20 = arith.mulf %18, %19 : vector<8x128xf32>
      %21 = arith.index_cast %arg3 : i32 to index
      %c0_13 = arith.constant 0 : index
      %c0_14 = arith.constant 0 : index
      %22 = vector.load %arg13[%21, %c0_13, %c0_14] : memref<1x8x128xf32, #tpu.memory_space<vmem>>, vector<1x8x128xf32>
      %23 = vector.shape_cast %22 : vector<1x8x128xf32> to vector<8x128xf32>
      %24 = vector.shape_cast %20 : vector<8x128xf32> to vector<1x8x128xf32>
      tpu.vector_store %arg13[%21, %c0_13, %c0_14], %24 {strides = array<i32>} : memref<1x8x128xf32, #tpu.memory_space<vmem>>, vector<1x8x128xf32>,
      %c0_15 = arith.constant 0 : index
      %c0_16 = arith.constant 0 : index
      %25 = vector.load %arg11[%c0_15, %c0_16] : memref<8x1xf32, #tpu.memory_space<vmem>>, vector<8x1xf32>
      %cst_17 = arith.constant dense<0xFF800000> : vector<8xf32>
      %26 = vector.multi_reduction <maximumf>, %20, %cst_17 [1] : vector<8x128xf32> to vector<8xf32>
      %27 = vector.shape_cast %26 : vector<8xf32> to vector<8x1xf32>
      %28 = arith.maximumf %25, %27 : vector<8x1xf32>
      %c0_18 = arith.constant 0 : index
      %c0_19 = arith.constant 0 : index
      %29 = vector.load %arg12[%c0_18, %c0_19] : memref<8x1xf32, #tpu.memory_space<vmem>>, vector<8x1xf32>
      %30 = arith.subf %25, %28 : vector<8x1xf32>
      %31 = math.exp %30 : vector<8x1xf32>
      %32 = arith.mulf %29, %31 : vector<8x1xf32>
      %33 = vector.broadcast %28 : vector<8x1xf32> to vector<8x128xf32>
      %34 = arith.subf %20, %33 : vector<8x128xf32>
      %35 = math.exp %34 : vector<8x128xf32>
      %cst_20 = arith.constant dense<0.000000e+00> : vector<8xf32>
      %36 = vector.multi_reduction <add>, %35, %cst_20 [1] : vector<8x128xf32> to vector<8xf32>
      %37 = vector.shape_cast %36 : vector<8xf32> to vector<8x1xf32>
      %38 = arith.addf %32, %37 : vector<8x1xf32>
      %c0_21 = arith.constant 0 : index
      %c0_22 = arith.constant 0 : index
      %39 = vector.load %arg12[%c0_21, %c0_22] : memref<8x1xf32, #tpu.memory_space<vmem>>, vector<8x1xf32>
      tpu.vector_store %arg12[%c0_21, %c0_22], %38 {strides = array<i32>} : memref<8x1xf32, #tpu.memory_space<vmem>>, vector<8x1xf32>,
      %c0_23 = arith.constant 0 : index
      %c0_24 = arith.constant 0 : index
      %40 = vector.load %arg11[%c0_23, %c0_24] : memref<8x1xf32, #tpu.memory_space<vmem>>, vector<8x1xf32>
      tpu.vector_store %arg11[%c0_23, %c0_24], %28 {strides = array<i32>} : memref<8x1xf32, #tpu.memory_space<vmem>>, vector<8x1xf32>,
    } else {
    }
    %c1_i32 = arith.constant 1 : i32
    %8 = arith.cmpi eq, %arg2, %c1_i32 : i32
    %9 = arith.extui %8 : i1 to i32
    %c0_i32_4 = arith.constant 0 : i32
    %10 = arith.cmpi ne, %9, %c0_i32_4 : i32
    scf.if %10 {
      %11 = arith.index_cast %arg3 : i32 to index
      %c0 = arith.constant 0 : index
      %c0_5 = arith.constant 0 : index
      %12 = vector.load %arg13[%11, %c0, %c0_5] : memref<1x8x128xf32, #tpu.memory_space<vmem>>, vector<1x8x128xf32>
      %13 = vector.shape_cast %12 : vector<1x8x128xf32> to vector<8x128xf32>
      %c0_6 = arith.constant 0 : index
      %c0_7 = arith.constant 0 : index
      %14 = vector.load %arg11[%c0_6, %c0_7] : memref<8x1xf32, #tpu.memory_space<vmem>>, vector<8x1xf32>
      %c0_8 = arith.constant 0 : index
      %c0_9 = arith.constant 0 : index
      %15 = vector.load %arg12[%c0_8, %c0_9] : memref<8x1xf32, #tpu.memory_space<vmem>>, vector<8x1xf32>
      %16 = math.log %15 : vector<8x1xf32>
      %17 = arith.addf %14, %16 : vector<8x1xf32>
      %c0_10 = arith.constant 0 : index
      %c0_11 = arith.constant 0 : index
      %c0_12 = arith.constant 0 : index
      %18 = vector.load %arg7[%c0_10, %c0_11, %c0_12] : memref<1x8x1xf32, #tpu.memory_space<vmem>>, vector<1x8x1xf32>
      %19 = vector.shape_cast %18 : vector<1x8x1xf32> to vector<8x1xf32>
      %20 = vector.broadcast %17 : vector<8x1xf32> to vector<8x128xf32>
      %21 = arith.subf %13, %20 : vector<8x128xf32>
      %22 = math.exp %21 : vector<8x128xf32>
      %23 = vector.broadcast %19 : vector<8x1xf32> to vector<8x128xf32>
      %24 = arith.mulf %23, %22 : vector<8x128xf32>
      %c0_13 = arith.constant 0 : index
      %c0_14 = arith.constant 0 : index
      %c0_15 = arith.constant 0 : index
      %25 = vector.load %arg9[%c0_13, %c0_14, %c0_15] : memref<1x16x1xi32, #tpu.memory_space<vmem>>, vector<1x16x1xi32>
      %26 = vector.shape_cast %25 : vector<1x16x1xi32> to vector<16x1xi32>
      %c128_i32 = arith.constant 128 : i32
      %27 = arith.muli %arg3, %c128_i32 : i32
      %28 = tpu.iota {dimensions = array<i32: 1>} : vector<16x128xi32>
      %29 = vector.broadcast %27 : i32 to vector<16x128xi32>
      %30 = arith.addi %29, %28 : vector<16x128xi32>
      %31 = vector.broadcast %26 : vector<16x1xi32> to vector<16x128xi32>
      %32 = arith.cmpi eq, %31, %30 : vector<16x128xi32>
      %33 = arith.extui %32 : vector<16x128xi1> to vector<16x128xi32>
      %34 = arith.sitofp %33 : vector<16x128xi32> to vector<16x128xf32>
      %35 = arith.truncf %34 : vector<16x128xf32> to vector<16x128xbf16>
      %c0_16 = arith.constant 0 : index
      %c0_17 = arith.constant 0 : index
      %c0_18 = arith.constant 0 : index
      %36 = vector.load %arg8[%c0_16, %c0_17, %c0_18] : memref<1x8x16xf32, #tpu.memory_space<vmem>>, vector<1x8x16xf32>
      %37 = vector.shape_cast %36 : vector<1x8x16xf32> to vector<8x16xf32>
      %38 = arith.truncf %37 : vector<8x16xf32> to vector<8x16xbf16>
      %cst = arith.constant dense<0.000000e+00> : vector<8x128xf32>
      %39 = tpu.matmul %38, %35, %cst {dimension_numbers = #tpu.dot_dimension_numbers<[1], [0], [0], [1], [0, 0, 1, 1], [], []>} : vector<8x16xbf16>, vector<16x128xbf16>, vector<8x128xf32> -> vector<8x128xf32>
      %40 = arith.addf %24, %39 : vector<8x128xf32>
      %cst_19 = arith.constant 1.000000e-18 : f32
      %41 = vector.broadcast %cst_19 : f32 to vector<8x128xf32>
      %42 = arith.addf %40, %41 : vector<8x128xf32>
      %43 = math.log %42 : vector<8x128xf32>
      %c0_20 = arith.constant 0 : index
      %c0_21 = arith.constant 0 : index
      %c0_22 = arith.constant 0 : index
      %44 = vector.load %arg10[%c0_20, %c0_21, %c0_22] : memref<1x8x128xf32, #tpu.memory_space<vmem>>, vector<1x8x128xf32>
      %45 = vector.shape_cast %44 : vector<1x8x128xf32> to vector<8x128xf32>
      %46 = vector.shape_cast %43 : vector<8x128xf32> to vector<1x8x128xf32>
      tpu.vector_store %arg10[%c0_20, %c0_21, %c0_22], %46 {strides = array<i32>} : memref<1x8x128xf32, #tpu.memory_space<vmem>>, vector<1x8x128xf32>,
    } else {
    }
    return
  }
  func.func @transform_0(%arg0: i32, %arg1: i32, %arg2: i32, %arg3: i32) -> (i32, i32, i32) {
    %c0_i32 = arith.constant 0 : i32
    %c0_i32_0 = arith.constant 0 : i32
    return %arg0, %arg1, %c0_i32 : i32, i32, i32
  }
  func.func @transform_1(%arg0: i32, %arg1: i32, %arg2: i32, %arg3: i32) -> (i32, i32) {
    %c1_i32 = arith.constant 1 : i32
    %0 = arith.subi %c1_i32, %arg2 : i32
    %1 = arith.muli %arg3, %0 : i32
    %c0_i32 = arith.constant 0 : i32
    %c0_i32_0 = arith.constant 0 : i32
    return %c0_i32, %1 : i32, i32
  }
  func.func @transform_2(%arg0: i32, %arg1: i32, %arg2: i32, %arg3: i32) -> (i32, i32, i32) {
    %c0_i32 = arith.constant 0 : i32
    %c0_i32_0 = arith.constant 0 : i32
    return %arg0, %c0_i32, %arg3 : i32, i32, i32
  }
  func.func @transform_3(%arg0: i32, %arg1: i32, %arg2: i32, %arg3: i32) -> (i32, i32, i32) {
    %c0_i32 = arith.constant 0 : i32
    %c0_i32_0 = arith.constant 0 : i32
    return %arg0, %arg1, %c0_i32 : i32, i32, i32
  }
  func.func @transform_4(%arg0: i32, %arg1: i32, %arg2: i32, %arg3: i32) -> (i32, i32, i32) {
    %c0_i32 = arith.constant 0 : i32
    %c0_i32_0 = arith.constant 0 : i32
    return %arg0, %arg1, %c0_i32 : i32, i32, i32
  }
  func.func @transform_5(%arg0: i32, %arg1: i32, %arg2: i32, %arg3: i32) -> (i32, i32, i32) {
    %c0_i32 = arith.constant 0 : i32
    %c0_i32_0 = arith.constant 0 : i32
    %c0_i32_1 = arith.constant 0 : i32
    return %arg0, %c0_i32, %c0_i32_0 : i32, i32, i32
  }
  func.func @transform_6(%arg0: i32, %arg1: i32, %arg2: i32, %arg3: i32) -> (i32, i32, i32) {
    %0 = arith.muli %arg3, %arg2 : i32
    %c0_i32 = arith.constant 0 : i32
    return %arg0, %arg1, %0 : i32, i32, i32
  }
}

</mosaic_0001>

<llo_original>
// kernel: tpu_custom_call.1
$region0: #{tpu_custom_call.1}
  #allocation0 [shape = 'u32[]', space=smem, size = 0x4, offset = 0x4, fixed_abs, tag = 'smem constant byte address 0x4 - core index']
  #allocation1 [shape = 'u32[144,128]{1,0:T(1,128)}', space=vmem, size = 0x12000, scoped, tag = 'internal scratch']
  #allocation2 [shape = 'f32[8,1]{1,0:T(8,128)}', space=vmem, size = 0x1000, scoped, tag = 'scratch operand']
  #allocation3 [shape = 'f32[8,1]{1,0:T(8,128)}', space=vmem, size = 0x1000, scoped, tag = 'scratch operand']
  #allocation4 [shape = 'f32[1,8,128]{2,1,0:T(8,128)}', space=vmem, size = 0x1000, scoped, tag = 'scratch operand']
  %s0 = inlined_call_operand.vmem [shape: bf16[2,8,32], index: 0, kind: input, shape index: {}]
  %s1 = inlined_call_operand.vmem [shape: bf16[32,128], index: 1, kind: input, shape index: {}]
  %s2 = inlined_call_operand.vmem [shape: f32[2,1,128], index: 2, kind: input, shape index: {}]
  %s3 = inlined_call_operand.vmem [shape: f32[2,8,1], index: 3, kind: input, shape index: {}]
  %s4 = inlined_call_operand.vmem [shape: f32[2,8,16], index: 4, kind: input, shape index: {}]
  %s5 = inlined_call_operand.vmem [shape: s32[2,16,1], index: 5, kind: input, shape index: {}]
  %s6 = inlined_call_operand.hbm [shape: f32[2,8,128], index: 6, kind: output, shape index: {}]
  %s7 = sld [smem:[#allocation0]]
  $region69: #{tpu_custom_call.1} parent=0
    _
  %s9 = ssub.s32 1, %s7
  %s10 = scalar_select 0, %s9, %s7
  $region1: #{tpu_custom_call.1} parent=0
    #allocation5 [shape = 'u8[8192]{0}', space=vmem, size = 0x2000, scoped, tag = 'output window, operand 0']
    #allocation6 [shape = 's32[2]{0}', space=sflag, size = 0x8, scoped, tag = 'scoped memory for tpu_custom_call.1']
    %11 = vsyncpa [#allocation6], 0
    %s12 = scalar_lea.sflag [#allocation6], 1
    %13 = vsyncpa %s12, 0
    loop: start=0, step=1, limit=6
    $region2: #{tpu_custom_call.1} parent=1 // loop_pre_header
      _
    $region3: #{tpu_custom_call.1} parent=1 // loop_header
      %s15 = sphi 0, %s19
      %p16 = scmp.ge.s32.totalorder %s15, 6
      %s22 = sphi 0, %s48
      %s23 = sphi 0, %s44
      %s24 = sphi 0, %s40
      %s25 = sphi 0, %s36
      %s26 = sphi 0, %s22
      %s27 = sphi 0, %s23
      %s28 = sphi 0, %s24
      %s29 = sphi 0, %s25
      %s30 = sphi 0, %s26
      %s31 = sphi 0, %s27
      %s32 = sphi 0, %s28
      %s33 = sphi 0, %s29
      %s53 = sphi 0, %s55
      %s56 = sphi 0, %s53
      %s57 = sphi 0, %s56
      %s73 = sphi 0, %s57
      %s83 = sphi 0, %s85
      %s86 = sphi 0, %s83
      %s87 = sphi 0, %s86
      %s103 = sphi 0, %s87
      %s111 = sphi 0, %s113
      %s114 = sphi 0, %s111
      %s115 = sphi 0, %s114
      %s131 = sphi 0, %s115
      %s139 = sphi 0, %s141
      %s142 = sphi 0, %s139
      %s143 = sphi 0, %s142
      %s159 = sphi 0, %s143
      %s167 = sphi 0, %s169
      %s170 = sphi 0, %s167
      %s171 = sphi 0, %s170
      %s187 = sphi 0, %s171
      %s193 = sphi 0, %s195
      %s196 = sphi 0, %s193
      %s197 = sphi 0, %s196
      %s213 = sphi 0, %s197
      %s225 = sphi 0, %s227
      %s228 = sphi 0, %s225
      %s229 = sphi 0, %s228
      %s245 = sphi 0, %s229
    $region4: #{tpu_custom_call.1} parent=1 // loop_header_branch
      %18 = sbr.rel (%p16) target = $region8
    $region5: #{tpu_custom_call.1} parent=1 // loop_body
      %s20 = ssub.s32 %s15, 1
      %s21 = ssub.s32 %s15, 2
      %s34 = sadd.s32 1, %s25
      %p35 = scmp.ge.s32.totalorder %s34, 1
      %s36 = scalar_select %p35, 0, %s34
      %s37 = sadd.s32 1, %s24
      %s38 = scalar_select %p35, %s37, %s24
      %p39 = scmp.ge.s32.totalorder %s38, 2
      %s40 = scalar_select %p39, 0, %s38
      %s41 = sadd.s32 1, %s23
      %s42 = scalar_select %p39, %s41, %s23
      %p43 = scmp.ge.s32.totalorder %s42, 1
      %s44 = scalar_select %p43, 0, %s42
      %s45 = sadd.s32 1, %s22
      %s46 = scalar_select %p43, %s45, %s22
      %p47 = scmp.ge.s32.totalorder %s46, 2
      %s48 = scalar_select %p47, 0, %s46
      %s49 = ssub.s32 %s22, %s48
      %s50 = ssub.s32 %s23, %s44
      %s51 = sor.u32 %s49, %s50
      %p52 = scmp.eq.s32.totalorder %s51, 0
      %s54 = sadd.s32 %s53, 1
      %s55 = scalar_select %p52, %s53, %s54
      %p58 = pneg %p52
      %p59 = scmp.eq.s32.totalorder %s15, 3
      %p60 = por %p58, %p59
      %p61 = scmp.ne.s32.totalorder %s53, %s56
      %p62 = scmp.eq.s32.totalorder %s15, 0
      %p63 = por %p61, %p62
      %p64 = scmp.ne.s32.totalorder %s53, %s56
      %p65 = scmp.eq.s32.totalorder %s20, 3
      %p66 = por %p64, %p65
      %p67 = scmp.ne.s32.totalorder %s56, %s57
      %p68 = scmp.eq.s32.totalorder %s20, 0
      %p69 = por %p67, %p68
      %p70 = scmp.ne.s32.totalorder %s56, %s57
      %p71 = scmp.eq.s32.totalorder %s21, 3
      %p72 = por %p70, %p71
      %p74 = scmp.ne.s32.totalorder %s57, %s73
      %p75 = scmp.eq.s32.totalorder %s21, 0
      %p76 = por %p74, %p75
      %s77 = ssub.s32 1, %s24
      %s78 = smul.u32 %s25, %s77
      %s79 = ssub.s32 1, %s40
      %s80 = smul.u32 %s36, %s79
      %s81 = ssub.s32 %s78, %s80
      %p82 = scmp.eq.s32.totalorder %s81, 0
      %s84 = sadd.s32 %s83, 1
      %s85 = scalar_select %p82, %s83, %s84
      %p88 = pneg %p82
      %p89 = scmp.eq.s32.totalorder %s15, 3
      %p90 = por %p88, %p89
      %p91 = scmp.ne.s32.totalorder %s83, %s86
      %p92 = scmp.eq.s32.totalorder %s15, 0
      %p93 = por %p91, %p92
      %p94 = scmp.ne.s32.totalorder %s83, %s86
      %p95 = scmp.eq.s32.totalorder %s20, 3
      %p96 = por %p94, %p95
      %p97 = scmp.ne.s32.totalorder %s86, %s87
      %p98 = scmp.eq.s32.totalorder %s20, 0
      %p99 = por %p97, %p98
      %p100 = scmp.ne.s32.totalorder %s86, %s87
      %p101 = scmp.eq.s32.totalorder %s21, 3
      %p102 = por %p100, %p101
      %p104 = scmp.ne.s32.totalorder %s87, %s103
      %p105 = scmp.eq.s32.totalorder %s21, 0
      %p106 = por %p104, %p105
      %s107 = ssub.s32 %s22, %s48
      %s108 = ssub.s32 %s25, %s36
      %s109 = sor.u32 %s107, %s108
      %p110 = scmp.eq.s32.totalorder %s109, 0
      %s112 = sadd.s32 %s111, 1
      %s113 = scalar_select %p110, %s111, %s112
      %p116 = pneg %p110
      %p117 = scmp.eq.s32.totalorder %s15, 3
      %p118 = por %p116, %p117
      %p119 = scmp.ne.s32.totalorder %s111, %s114
      %p120 = scmp.eq.s32.totalorder %s15, 0
      %p121 = por %p119, %p120
      %p122 = scmp.ne.s32.totalorder %s111, %s114
      %p123 = scmp.eq.s32.totalorder %s20, 3
      %p124 = por %p122, %p123
      %p125 = scmp.ne.s32.totalorder %s114, %s115
      %p126 = scmp.eq.s32.totalorder %s20, 0
      %p127 = por %p125, %p126
      %p128 = scmp.ne.s32.totalorder %s114, %s115
      %p129 = scmp.eq.s32.totalorder %s21, 3
      %p130 = por %p128, %p129
      %p132 = scmp.ne.s32.totalorder %s115, %s131
      %p133 = scmp.eq.s32.totalorder %s21, 0
      %p134 = por %p132, %p133
      %s135 = ssub.s32 %s22, %s48
      %s136 = ssub.s32 %s23, %s44
      %s137 = sor.u32 %s135, %s136
      %p138 = scmp.eq.s32.totalorder %s137, 0
      %s140 = sadd.s32 %s139, 1
      %s141 = scalar_select %p138, %s139, %s140
      %p144 = pneg %p138
      %p145 = scmp.eq.s32.totalorder %s15, 3
      %p146 = por %p144, %p145
      %p147 = scmp.ne.s32.totalorder %s139, %s142
      %p148 = scmp.eq.s32.totalorder %s15, 0
      %p149 = por %p147, %p148
      %p150 = scmp.ne.s32.totalorder %s139, %s142
      %p151 = scmp.eq.s32.totalorder %s20, 3
      %p152 = por %p150, %p151
      %p153 = scmp.ne.s32.totalorder %s142, %s143
      %p154 = scmp.eq.s32.totalorder %s20, 0
      %p155 = por %p153, %p154
      %p156 = scmp.ne.s32.totalorder %s142, %s143
      %p157 = scmp.eq.s32.totalorder %s21, 3
      %p158 = por %p156, %p157
      %p160 = scmp.ne.s32.totalorder %s143, %s159
      %p161 = scmp.eq.s32.totalorder %s21, 0
      %p162 = por %p160, %p161
      %s163 = ssub.s32 %s22, %s48
      %s164 = ssub.s32 %s23, %s44
      %s165 = sor.u32 %s163, %s164
      %p166 = scmp.eq.s32.totalorder %s165, 0
      %s168 = sadd.s32 %s167, 1
      %s169 = scalar_select %p166, %s167, %s168
      %p172 = pneg %p166
      %p173 = scmp.eq.s32.totalorder %s15, 3
      %p174 = por %p172, %p173
      %p175 = scmp.ne.s32.totalorder %s167, %s170
      %p176 = scmp.eq.s32.totalorder %s15, 0
      %p177 = por %p175, %p176
      %p178 = scmp.ne.s32.totalorder %s167, %s170
      %p179 = scmp.eq.s32.totalorder %s20, 3
      %p180 = por %p178, %p179
      %p181 = scmp.ne.s32.totalorder %s170, %s171
      %p182 = scmp.eq.s32.totalorder %s20, 0
      %p183 = por %p181, %p182
      %p184 = scmp.ne.s32.totalorder %s170, %s171
      %p185 = scmp.eq.s32.totalorder %s21, 3
      %p186 = por %p184, %p185
      %p188 = scmp.ne.s32.totalorder %s171, %s187
      %p189 = scmp.eq.s32.totalorder %s21, 0
      %p190 = por %p188, %p189
      %s191 = ssub.s32 %s22, %s48
      %p192 = scmp.eq.s32.totalorder %s191, 0
      %s194 = sadd.s32 %s193, 1
      %s195 = scalar_select %p192, %s193, %s194
      %p198 = pneg %p192
      %p199 = scmp.eq.s32.totalorder %s15, 3
      %p200 = por %p198, %p199
      %p201 = scmp.ne.s32.totalorder %s193, %s196
      %p202 = scmp.eq.s32.totalorder %s15, 0
      %p203 = por %p201, %p202
      %p204 = scmp.ne.s32.totalorder %s193, %s196
      %p205 = scmp.eq.s32.totalorder %s20, 3
      %p206 = por %p204, %p205
      %p207 = scmp.ne.s32.totalorder %s196, %s197
      %p208 = scmp.eq.s32.totalorder %s20, 0
      %p209 = por %p207, %p208
      %p210 = scmp.ne.s32.totalorder %s196, %s197
      %p211 = scmp.eq.s32.totalorder %s21, 3
      %p212 = por %p210, %p211
      %p214 = scmp.ne.s32.totalorder %s197, %s213
      %p215 = scmp.eq.s32.totalorder %s21, 0
      %p216 = por %p214, %p215
      %s217 = smul.u32 %s25, %s24
      %s218 = smul.u32 %s36, %s40
      %s219 = ssub.s32 %s22, %s48
      %s220 = ssub.s32 %s23, %s44
      %s221 = sor.u32 %s219, %s220
      %s222 = ssub.s32 %s217, %s218
      %s223 = sor.u32 %s221, %s222
      %p224 = scmp.eq.s32.totalorder %s223, 0
      %s226 = sadd.s32 %s225, 1
      %s227 = scalar_select %p224, %s225, %s226
      %p230 = pneg %p224
      %p231 = scmp.eq.s32.totalorder %s15, 3
      %p232 = por %p230, %p231
      %p233 = scmp.ne.s32.totalorder %s225, %s228
      %p234 = scmp.eq.s32.totalorder %s15, 0
      %p235 = por %p233, %p234
      %p236 = scmp.ne.s32.totalorder %s225, %s228
      %p237 = scmp.eq.s32.totalorder %s20, 3
      %p238 = por %p236, %p237
      %p239 = scmp.ne.s32.totalorder %s228, %s229
      %p240 = scmp.eq.s32.totalorder %s20, 0
      %p241 = por %p239, %p240
      %p242 = scmp.ne.s32.totalorder %s228, %s229
      %p243 = scmp.eq.s32.totalorder %s21, 3
      %p244 = por %p242, %p243
      %p246 = scmp.ne.s32.totalorder %s229, %s245
      %p247 = scmp.eq.s32.totalorder %s21, 0
      %p248 = por %p246, %p247
      %p249 = scmp.le.s32.totalorder 1, %s15
      %p250 = scmp.lt.s32.totalorder %s15, 5
      %p251 = pnand %p249, %p250
      %p252 = pneg %p251
      // Predicated region
      $region9: #{tpu_custom_call.1} parent=5 // pred_check
        _
      $region10: #{tpu_custom_call.1} parent=5 // pred_check_branch
        %254 = sbr.rel (%p251) target = $region12
      $region11: #{tpu_custom_call.1} parent=5 // pred_region
        %s255 = ssub.s32 %s15, 1
      $region12: #{tpu_custom_call.1} parent=5 // pred_fallthru
        _
      %p256 = scmp.lt.s32.totalorder %s15, 4
      // Predicated region
      $region13: #{tpu_custom_call.1} parent=5 // pred_check
        %p257 = pneg %p256
      $region14: #{tpu_custom_call.1} parent=5 // pred_check_branch
        %259 = sbr.rel (%p257) target = $region16
      $region15: #{tpu_custom_call.1} parent=5 // pred_region
        // Predicated region
        $region17: #{tpu_custom_call.1} parent=15 // pred_check
          %p260 = pneg %p63
        $region18: #{tpu_custom_call.1} parent=15 // pred_check_branch
          %262 = sbr.rel (%p260) target = $region20
        $region19: #{tpu_custom_call.1} parent=15 // pred_region
          %p263 = scmp.lt.s32.totalorder %s22, 1
          %s264 = scalar_select %p263, %s22, 1
          %p265 = scmp.lt.s32.totalorder %s23, 0
          %s266 = scalar_select %p265, %s23, 0
          %s267 = sadd.s32 %s266, %s264
          %s268 = smul.addr %s267, 4
          %s269 = scalar_lea.vmem %s0, %s268
        $region20: #{tpu_custom_call.1} parent=15 // pred_fallthru
          _
        // Predicated region
        $region21: #{tpu_custom_call.1} parent=15 // pred_check
          %p270 = pneg %p93
        $region22: #{tpu_custom_call.1} parent=15 // pred_check_branch
          %272 = sbr.rel (%p270) target = $region24
        $region23: #{tpu_custom_call.1} parent=15 // pred_region
          %s273 = ssub.s32 1, %s24
          %s274 = smul.u32 %s25, %s273
          %p275 = scmp.lt.s32.totalorder %s274, 0
          %s276 = scalar_select %p275, %s274, 0
          %s277 = smul.addr %s276, 4
          %s278 = scalar_lea.vmem %s1, %s277
          %s279 = ssub.s32 1, %s24
          %s280 = smul.u32 %s25, %s279
        $region24: #{tpu_custom_call.1} parent=15 // pred_fallthru
          _
        // Predicated region
        $region25: #{tpu_custom_call.1} parent=15 // pred_check
          %p281 = pneg %p121
        $region26: #{tpu_custom_call.1} parent=15 // pred_check_branch
          %283 = sbr.rel (%p281) target = $region28
        $region27: #{tpu_custom_call.1} parent=15 // pred_region
          %p284 = scmp.lt.s32.totalorder %s22, 1
          %s285 = scalar_select %p284, %s22, 1
          %p286 = scmp.lt.s32.totalorder %s25, 0
          %s287 = scalar_select %p286, %s25, 0
          %s288 = sadd.s32 %s287, %s285
          %s289 = scalar_lea.vmem %s2, %s288
        $region28: #{tpu_custom_call.1} parent=15 // pred_fallthru
          _
        // Predicated region
        $region29: #{tpu_custom_call.1} parent=15 // pred_check
          %p290 = pneg %p149
        $region30: #{tpu_custom_call.1} parent=15 // pred_check_branch
          %292 = sbr.rel (%p290) target = $region32
        $region31: #{tpu_custom_call.1} parent=15 // pred_region
          %p293 = scmp.lt.s32.totalorder %s22, 1
          %s294 = scalar_select %p293, %s22, 1
          %p295 = scmp.lt.s32.totalorder %s23, 0
          %s296 = scalar_select %p295, %s23, 0
          %s297 = sadd.s32 %s296, %s294
          %s298 = smul.addr %s297, 8
          %s299 = scalar_lea.vmem %s3, %s298
        $region32: #{tpu_custom_call.1} parent=15 // pred_fallthru
          _
        // Predicated region
        $region33: #{tpu_custom_call.1} parent=15 // pred_check
          %p300 = pneg %p177
        $region34: #{tpu_custom_call.1} parent=15 // pred_check_branch
          %302 = sbr.rel (%p300) target = $region36
        $region35: #{tpu_custom_call.1} parent=15 // pred_region
          %p303 = scmp.lt.s32.totalorder %s22, 1
          %s304 = scalar_select %p303, %s22, 1
          %p305 = scmp.lt.s32.totalorder %s23, 0
          %s306 = scalar_select %p305, %s23, 0
          %s307 = sadd.s32 %s306, %s304
          %s308 = smul.addr %s307, 8
          %s309 = scalar_lea.vmem %s4, %s308
        $region36: #{tpu_custom_call.1} parent=15 // pred_fallthru
          _
        // Predicated region
        $region37: #{tpu_custom_call.1} parent=15 // pred_check
          %p310 = pneg %p203
        $region38: #{tpu_custom_call.1} parent=15 // pred_check_branch
          %312 = sbr.rel (%p310) target = $region40
        $region39: #{tpu_custom_call.1} parent=15 // pred_region
          %p313 = scmp.lt.s32.totalorder %s22, 1
          %s314 = scalar_select %p313, %s22, 1
          %s315 = smul.addr %s314, 2
          %s316 = smul.addr %s315, 8
          %s317 = scalar_lea.vmem %s5, %s316
        $region40: #{tpu_custom_call.1} parent=15 // pred_fallthru
          _
      $region16: #{tpu_custom_call.1} parent=5 // pred_fallthru
        _
      %p318 = scmp.le.s32.totalorder 1, %s15
      %p319 = scmp.lt.s32.totalorder %s15, 5
      %p320 = pnand %p318, %p319
      %p321 = pneg %p320
      // Predicated region
      $region41: #{tpu_custom_call.1} parent=5 // pred_check
        _
      $region42: #{tpu_custom_call.1} parent=5 // pred_check_branch
        %323 = sbr.rel (%p320) target = $region44
      $region43: #{tpu_custom_call.1} parent=5 // pred_region
        %s324 = ssub.s32 %s15, 1
        %p325 = scmp.lt.s32.totalorder %s26, 1
        %s326 = scalar_select %p325, %s26, 1
        %p327 = scmp.lt.s32.totalorder %s27, 0
        %s328 = scalar_select %p327, %s27, 0
        %s329 = sadd.s32 %s328, %s326
        %s330 = smul.addr %s329, 4
        %s331 = scalar_lea.vmem %s0, %s330
        %p332 = pneg %p69
        %p333 = pneg %p66
        %s334 = ssub.s32 1, %s28
        %s335 = smul.u32 %s29, %s334
        %p336 = scmp.lt.s32.totalorder %s335, 0
        %s337 = scalar_select %p336, %s335, 0
        %s338 = smul.addr %s337, 4
        %s339 = scalar_lea.vmem %s1, %s338
        %p340 = pneg %p99
        %p341 = pneg %p96
        %p342 = scmp.lt.s32.totalorder %s26, 1
        %s343 = scalar_select %p342, %s26, 1
        %p344 = scmp.lt.s32.totalorder %s29, 0
        %s345 = scalar_select %p344, %s29, 0
        %s346 = sadd.s32 %s345, %s343
        %s347 = scalar_lea.vmem %s2, %s346
        %p348 = pneg %p127
        %p349 = pneg %p124
        %p350 = scmp.lt.s32.totalorder %s26, 1
        %s351 = scalar_select %p350, %s26, 1
        %p352 = scmp.lt.s32.totalorder %s27, 0
        %s353 = scalar_select %p352, %s27, 0
        %s354 = sadd.s32 %s353, %s351
        %s355 = smul.addr %s354, 8
        %s356 = scalar_lea.vmem %s3, %s355
        %p357 = pneg %p155
        %p358 = pneg %p152
        %p359 = scmp.lt.s32.totalorder %s26, 1
        %s360 = scalar_select %p359, %s26, 1
        %p361 = scmp.lt.s32.totalorder %s27, 0
        %s362 = scalar_select %p361, %s27, 0
        %s363 = sadd.s32 %s362, %s360
        %s364 = smul.addr %s363, 8
        %s365 = scalar_lea.vmem %s4, %s364
        %p366 = pneg %p183
        %p367 = pneg %p180
        %p368 = scmp.lt.s32.totalorder %s26, 1
        %s369 = scalar_select %p368, %s26, 1
        %s370 = smul.addr %s369, 2
        %s371 = smul.addr %s370, 8
        %s372 = scalar_lea.vmem %s5, %s371
        %p373 = pneg %p209
        %p374 = pneg %p206
        %p375 = pneg %p241
        %p376 = pneg %p238
        %s377 = sand.u32 %s228, 1
        %s378 = scalar_lea.sflag [#allocation6], %s377
        %s379 = sand.u32 %s228, 1
        %s380 = smul.addr %s379, 8
        %s381 = scalar_lea.vmem [#allocation5], %s380
        %p382 = scmp.lt.s32.totalorder %s26, 1
        %s383 = scalar_select %p382, %s26, 1
        %p384 = scmp.lt.s32.totalorder %s27, 0
        %s385 = scalar_select %p384, %s27, 0
        %s386 = sadd.s32 %s385, %s383
        %s387 = smul.addr %s386, 4
        %s388 = scalar_lea.vmem %s0, %s387
        %s389 = ssub.s32 1, %s28
        %s390 = smul.u32 %s29, %s389
        %p391 = scmp.lt.s32.totalorder %s390, 0
        %s392 = scalar_select %p391, %s390, 0
        %s393 = smul.addr %s392, 4
        %s394 = scalar_lea.vmem %s1, %s393
        %s395 = ssub.s32 1, %s28
        %s396 = smul.u32 %s29, %s395
        %p397 = scmp.lt.s32.totalorder %s26, 1
        %s398 = scalar_select %p397, %s26, 1
        %p399 = scmp.lt.s32.totalorder %s29, 0
        %s400 = scalar_select %p399, %s29, 0
        %s401 = sadd.s32 %s400, %s398
        %s402 = scalar_lea.vmem %s2, %s401
        %p403 = scmp.lt.s32.totalorder %s26, 1
        %s404 = scalar_select %p403, %s26, 1
        %p405 = scmp.lt.s32.totalorder %s27, 0
        %s406 = scalar_select %p405, %s27, 0
        %s407 = sadd.s32 %s406, %s404
        %s408 = smul.addr %s407, 8
        %s409 = scalar_lea.vmem %s3, %s408
        %p410 = scmp.lt.s32.totalorder %s26, 1
        %s411 = scalar_select %p410, %s26, 1
        %p412 = scmp.lt.s32.totalorder %s27, 0
        %s413 = scalar_select %p412, %s27, 0
        %s414 = sadd.s32 %s413, %s411
        %s415 = smul.addr %s414, 8
        %s416 = scalar_lea.vmem %s4, %s415
        %p417 = scmp.lt.s32.totalorder %s26, 1
        %s418 = scalar_select %p417, %s26, 1
        %s419 = smul.addr %s418, 2
        %s420 = smul.addr %s419, 8
        %s421 = scalar_lea.vmem %s5, %s420
        %s422 = smul.u32 %s29, %s28
        %p424 = scmp.eq.s32.totalorder %s28, 0
        %p425 = scmp.eq.s32.totalorder %s29, 0
        %p426 = pnand %p424, %p425
        %p427 = pneg %p426
        // Predicated region
        $region45: #{tpu_custom_call.1} parent=43 // pred_check
          _
        $region46: #{tpu_custom_call.1} parent=43 // pred_check_branch
          %429 = sbr.rel (%p426) target = $region48
        $region47: #{tpu_custom_call.1} parent=43 // pred_region
          %vm430 = vcmask 7168
          %431 = vst.msk [vmem:[#allocation2] sm:$0xff] %vm430, -inf
          %432 = vst.msk [vmem:[#allocation3] sm:$0xff] %vm430, 0.0
        $region48: #{tpu_custom_call.1} parent=43 // pred_fallthru
          _
        // Predicated region
        $region49: #{tpu_custom_call.1} parent=43 // pred_check
          %p433 = pneg %p424
        $region50: #{tpu_custom_call.1} parent=43 // pred_check_branch
          %435 = sbr.rel (%p433) target = $region52
        $region51: #{tpu_custom_call.1} parent=43 // pred_region
          %v436 = vld [vmem:[%s388] sm:$0xf]
          %v437 = vld [vmem:[%s394] sm:$0xf]
          %v438 = vld [vmem:[%s394 + $0x4] sm:$0xf]
          %v439 = vld [vmem:[%s394 + $0x8] sm:$0xf]
          %v440 = vld [vmem:[%s394 + $0xc] sm:$0xf]
          %v441 = vld [vmem:[%s402] sm:$0x1]
          %v443 = vlaneseq
          %v444 = vshrl.u32 %v443, 7
          %v445 = vsub.s32 0, %v444
          %v446 = vrot.slane %v441, %v445
          %v452 = vunpack.c.l.b16 %v437
          %v453 = vunpack.c.l.b16 %v438
          %v454 = vunpack.c.l.b16 %v439
          %v455 = vunpack.c.l.b16 %v440
          %v456 = vpack.c.b16 %v453, %v452
          %v457 = vpack.c.b16 %v455, %v454
          %vm460 = vcmask 261120
          %v462 = vsel %vm460, %v436, 0
          %464 = vmatprep.subr.bf16.mxu0 0
          %465 = vmatpush1.bf16.msra.mxu0 0
          %466 = vmatprep.subr.bf16.mxu0 0
          %467 = vmatpush1.bf16.msra.mxu0 0
          %468 = vmatprep.subr.bf16.mxu0 0
          %469 = vmatpush1.bf16.msra.mxu0 0
          %470 = vmatprep.subr.bf16.mxu0 0
          %471 = vmatpush1.bf16.msra.mxu0 0
          %472 = vmatprep.subr.bf16.mxu0 0
          %473 = vmatpush1.bf16.msra.mxu0 0
          %474 = vmatprep.subr.bf16.mxu0 0
          %475 = vmatpush1.bf16.msra.mxu0 0
          %476 = vmatprep.subr.bf16.mxu0 0
          %477 = vmatpush1.bf16.msra.mxu0 %v457
          %478 = vmatprep.subr.bf16.mxu0 0
          %479 = vmatpush1.bf16.msra.mxu0 %v456
          %480 = vmatprep.subr.bf16.mxu0 0
          %481 = vmatpush2.bf16.msra.mxu0 0
          %482 = vmatprep.subr.bf16.mxu0 0
          %483 = vmatpush2.bf16.msra.mxu0 0
          %484 = vmatprep.subr.bf16.mxu0 0
          %485 = vmatpush2.bf16.msra.mxu0 0
          %486 = vmatprep.subr.bf16.mxu0 0
          %487 = vmatpush2.bf16.msra.mxu0 0
          %488 = vmatprep.subr.bf16.mxu0 0
          %489 = vmatpush2.bf16.msra.mxu0 0
          %490 = vmatprep.subr.bf16.mxu0 0
          %491 = vmatpush2.bf16.msra.mxu0 0
          %492 = vmatprep.subr.bf16.mxu0 0
          %493 = vmatpush2.bf16.msra.mxu0 0
          %494 = vmatprep.subr.bf16.mxu0 0
          %495 = vmatpush2.bf16.msra.mxu0 0
          %496 = vmatprep.mubr.bf16.mxu0 0
          %497 = vmatmul.mubr.bf16.gmra.mxu0 %v462
          %v498 = vpop.f32.mrf.mxu0
          %v499 = vadd.f32 %v446, %v498
          %v500 = vpop.f32.mrf.mxu0
          %v501 = vpop.f32.mrf.mxu0
          %v502 = vpop.f32.mrf.mxu0
          %503 = vdwg.mxu0
          %s504 = smul.u32 %s29, 8
          %s505 = scalar_lea.vmem [#allocation4], %s504
          %506 = vst [vmem:[%s505] sm:$0xff] %v499
          %v507 = vld [vmem:[#allocation2] sm:$0xff]
          %508 = vmax.xlane.f32.xlu0 %v499
          %v509 = vpop.xlane.xlu0 %508
          %v510 = vmax.f32 %v507, %v509
          %v511 = vld [vmem:[#allocation3] sm:$0xff]
          %v512 = vsub.f32 %v507, %v510
          %v513 = vmul.f32 %v512, 1.442695
          %v514 = vpow.pop %v513
          %v515 = vmul.f32 %v511, %v514
          %517 = vset.pattern.permute.xlu0 0
          %518 = vperm.xlu0 %517, %v510
          %v519 = vpop.permute.xlu0 %518
          %v521 = vsub.f32 %v499, %v519
          %v522 = vmul.f32 %v521, 1.442695
          %v523 = vpow.pop %v522
          %524 = vadd.xlane.f32.xlu0 %v523
          %v525 = vpop.xlane.xlu0 %524
          %v526 = vadd.f32 %v515, %v525
          %vm527 = vcmask 7168
          %528 = vst.msk [vmem:[#allocation3] sm:$0xff] %vm527, %v526
          %529 = vst.msk [vmem:[#allocation2] sm:$0xff] %vm527, %v510
        $region52: #{tpu_custom_call.1} parent=43 // pred_fallthru
          _
        %p530 = scmp.eq.s32.totalorder %s28, 1
        // Predicated region
        $region53: #{tpu_custom_call.1} parent=43 // pred_check
          %p531 = pneg %p530
        $region54: #{tpu_custom_call.1} parent=43 // pred_check_branch
          %533 = sbr.rel (%p531) target = $region56
        $region55: #{tpu_custom_call.1} parent=43 // pred_region
          %s534 = smul.u32 %s29, 8
          %s535 = scalar_lea.vmem [#allocation4], %s534
          %v536 = vld [vmem:[%s535] sm:$0xff]
          %v537 = vld [vmem:[#allocation2] sm:$0xff]
          %v538 = vld [vmem:[#allocation3] sm:$0xff]
          %v539 = vlog2.pop %v538
          %v540 = vmul.f32 %v539, 0.6931472
          %v541 = vadd.f32 %v537, %v540
          %v542 = vld [vmem:[%s409] sm:$0xff]
          %544 = vset.pattern.permute.xlu0 0
          %545 = vperm.xlu0 %544, %v541
          %v546 = vpop.permute.xlu0 %545
          %v548 = vsub.f32 %v536, %v546
          %v549 = vmul.f32 %v548, 1.442695
          %v550 = vpow.pop %v549
          %552 = vset.pattern.permute.xlu0 0
          %553 = vperm.xlu0 %552, %v542
          %v554 = vpop.permute.xlu0 %553
          %v556 = vmul.f32 %v554, %v550
          %v557 = vld [vmem:[%s421] sm:$0xff]
          %v558 = vld [vmem:[%s421 + $0x8] sm:$0xff]
          %s559 = smul.u32 %s29, 128
          %v560 = vlaneseq
          %v561 = vand.u32 %v560, 127
          %v562 = vstv %s559
          %v563 = vadd.s32 %v562, %v561
          %564 = vset.pattern.permute.xlu0 0
          %565 = vperm.xlu0 %564, %v557
          %v566 = vpop.permute.xlu0 %565
          %567 = vset.pattern.permute.xlu0 0
          %568 = vperm.xlu0 %567, %v558
          %v569 = vpop.permute.xlu0 %568
          %vm570 = vcmp.eq.s32.totalorder %v566, %v563
          %vm571 = vcmp.eq.s32.totalorder %v569, %v563
          %v572 = vsel %vm570, 1, 0
          %v573 = vsel %vm571, 1, 0
          %v574 = vcvt.s32.f32 %v572
          %v575 = vcvt.s32.f32 %v573
          %v576 = vpack.c.bf16 %v575, %v574
          %v577 = vld [vmem:[%s416] sm:$0xff]
          %v578 = vpack.c.bf16 %v577, %v577
          %vm579 = vcmask 130048
          %v581 = vsel %vm579, %v578, 0
          %583 = vmatprep.subr.bf16.mxu0 0
          %584 = vmatpush1.bf16.msra.mxu0 0
          %585 = vmatprep.subr.bf16.mxu0 0
          %586 = vmatpush1.bf16.msra.mxu0 0
          %587 = vmatprep.subr.bf16.mxu0 0
          %588 = vmatpush1.bf16.msra.mxu0 0
          %589 = vmatprep.subr.bf16.mxu0 0
          %590 = vmatpush1.bf16.msra.mxu0 0
          %591 = vmatprep.subr.bf16.mxu0 0
          %592 = vmatpush1.bf16.msra.mxu0 0
          %593 = vmatprep.subr.bf16.mxu0 0
          %594 = vmatpush1.bf16.msra.mxu0 0
          %595 = vmatprep.subr.bf16.mxu0 0
          %596 = vmatpush1.bf16.msra.mxu0 0
          %597 = vmatprep.subr.bf16.mxu0 0
          %598 = vmatpush1.bf16.msra.mxu0 %v576
          %599 = vmatprep.subr.bf16.mxu0 0
          %600 = vmatpush2.bf16.msra.mxu0 0
          %601 = vmatprep.subr.bf16.mxu0 0
          %602 = vmatpush2.bf16.msra.mxu0 0
          %603 = vmatprep.subr.bf16.mxu0 0
          %604 = vmatpush2.bf16.msra.mxu0 0
          %605 = vmatprep.subr.bf16.mxu0 0
          %606 = vmatpush2.bf16.msra.mxu0 0
          %607 = vmatprep.subr.bf16.mxu0 0
          %608 = vmatpush2.bf16.msra.mxu0 0
          %609 = vmatprep.subr.bf16.mxu0 0
          %610 = vmatpush2.bf16.msra.mxu0 0
          %611 = vmatprep.subr.bf16.mxu0 0
          %612 = vmatpush2.bf16.msra.mxu0 0
          %613 = vmatprep.subr.bf16.mxu0 0
          %614 = vmatpush2.bf16.msra.mxu0 0
          %615 = vmatprep.mubr.bf16.mxu0 0
          %616 = vmatmul.mubr.bf16.gmra.mxu0 %v581
          %v617 = vpop.f32.mrf.mxu0
          %v618 = vadd.f32 0.0, %v617
          %v619 = vpop.f32.mrf.mxu0
          %v620 = vpop.f32.mrf.mxu0
          %v621 = vpop.f32.mrf.mxu0
          %622 = vdwg.mxu0
          %v623 = vadd.f32 %v556, %v618
          %v624 = vadd.f32 %v623, 1e-18
          %v625 = vlog2.pop %v624
          %v626 = vmul.f32 %v625, 0.6931472
          %627 = vst [vmem:[%s381] sm:$0xff] %v626
        $region56: #{tpu_custom_call.1} parent=43 // pred_fallthru
          _
        %s628 = sand.u32 %s228, 1
        %s629 = scalar_lea.sflag [#allocation6], %s628
        %s630 = sand.u32 %s228, 1
        %s631 = smul.addr %s630, 8
        %s632 = scalar_lea.vmem [#allocation5], %s631
        // Predicated region
        $region57: #{tpu_custom_call.1} parent=43 // pred_check
          %p633 = pneg %p238
        $region58: #{tpu_custom_call.1} parent=43 // pred_check_branch
          %635 = sbr.rel (%p633) target = $region60
        $region59: #{tpu_custom_call.1} parent=43 // pred_region
          %s636 = smul.u32 %s29, %s28
          %s638 = ssub.s32 128, 128
          %639 = vsyncadd %s629, %s638
          %s640 = sadd.s32 %s636, %s27
          %s641 = sadd.s32 %s640, %s26
          %s642 = smul.addr %s641, 128
          %s643 = scalar_lea.hbm %s6, %s642
          %s645 = sshll.u32 %s632, 4
          %s646 = int_to_ptr.vmem [resolvable:$true] %s645
          %648 = dma.vmem_to_hbm [thread:$0]  %s646, 128, %s643, %s629
        $region60: #{tpu_custom_call.1} parent=43 // pred_fallthru
          _
      $region44: #{tpu_custom_call.1} parent=5 // pred_fallthru
        _
      %p649 = scmp.le.s32.totalorder 2, %s15
      // Predicated region
      $region61: #{tpu_custom_call.1} parent=5 // pred_check
        %p650 = pneg %p649
      $region62: #{tpu_custom_call.1} parent=5 // pred_check_branch
        %652 = sbr.rel (%p650) target = $region64
      $region63: #{tpu_custom_call.1} parent=5 // pred_region
        %s653 = ssub.s32 %s15, 2
        // Predicated region
        $region65: #{tpu_custom_call.1} parent=63 // pred_check
          %p654 = pneg %p244
        $region66: #{tpu_custom_call.1} parent=63 // pred_check_branch
          %656 = sbr.rel (%p654) target = $region68
        $region67: #{tpu_custom_call.1} parent=63 // pred_region
          %s657 = sand.u32 %s229, 1
          %s658 = scalar_lea.sflag [#allocation6], %s657
          %s659 = sand.u32 %s229, 1
          %s660 = smul.addr %s659, 8
          %s661 = scalar_lea.vmem [#allocation5], %s660
          %662 = dma.done %s658, 128
        $region68: #{tpu_custom_call.1} parent=63 // pred_fallthru
          _
      $region64: #{tpu_custom_call.1} parent=5 // pred_fallthru
        _
    $region6: #{tpu_custom_call.1} parent=1 // loop_footer
      %s19 = sadd.s32 1, %s15
    $region7: #{tpu_custom_call.1} parent=1 // loop_footer_branch
      %14 = sbr.rel target = $region3
    $region8: #{tpu_custom_call.1} parent=1 // loop_exit
      _
    %663 = vsyncpa [#allocation6], 1
    %s664 = scalar_lea.sflag [#allocation6], 1
    %665 = vsyncpa %s664, 1

</llo_original>
